<compile_context>
chip_gen: v7x
topology: tpu7x:2x2x1
jax: 0.10.0
libtpu: 0.0.40
codegen_flags: <defaults>
</compile_context>

<pallas_src>
import math
import numpy as np
import jax
import jax.numpy as jnp
from jax.experimental import pallas as pl
from jax.experimental.pallas import tpu as pltpu


# ---------------------------------------------------------------------------
# Ring ("part") weight matrix. R[p, k] is the averaging weight of flattened
# pixel p for output part k. Column 0 is the outermost shell, matching the
# `result.insert(0, ...)` ordering of the PyTorch loop; the 1/area divisors of
# AdaptiveAvgPool2d (which averages over the *whole* window, zeroed interior
# included) are folded in.
# ---------------------------------------------------------------------------
def build_ring_matrix(H, W, block, dtype=jnp.float32):
    c_h, c_w = H // 2, W // 2
    per_h = math.floor(H / (2 * block))
    per_w = math.floor(W / (2 * block))
    # TODO(synk): per_h < 1 triggers a bilinear-interpolate resize in the
    # original module; that branch is not implemented here.
    assert per_h >= 1 and per_w >= 1, "feature map too small for `block` parts"
    # The original code's F.pad mixes per_h/per_w across H/W and has an
    # asymmetric `ep` branch for odd sizes; we replicate the symmetric square
    # case (the one exercised by CVUSA feature maps).
    assert per_h == per_w and H % 2 == 0 and W % 2 == 0

    ys = np.arange(H)[:, None]
    xs = np.arange(W)[None, :]

    def window(i):
        return ((ys >= c_h - i * per_h) & (ys < c_h + i * per_h) &
                (xs >= c_w - i * per_w) & (xs < c_w + i * per_w)).astype(np.float64)

    R = np.zeros((H * W, block), dtype=np.float64)
    for i in range(1, block + 1):
        if i < block:
            m = window(i)
            area = (2 * i * per_h) * (2 * i * per_w)
        else:                                   # last part: whole feature map
            m = np.ones((H, W), dtype=np.float64)
            area = H * W
        if i > 1:                               # no_overlap=True: zero the inner window
            m = m - window(i - 1)
        R[:, block - i] = (m / area).reshape(-1)  # outermost part -> column 0
    return jnp.asarray(R, dtype=dtype)


# ---------------------------------------------------------------------------
# Pallas kernel: one matmul computes every part-pool for a (TM, HW) row slab.
# ---------------------------------------------------------------------------
def _lpn_pool_kernel(x_ref, r_ref, o_ref):
    # x_ref: (TM, HW)   r_ref: (HW, BLK)   o_ref: (TM, BLK)
    o_ref[...] = jnp.dot(x_ref[...], r_ref[...],
                         preferred_element_type=jnp.float32).astype(o_ref.dtype)


def lpn_part_pool_avg(feat, ring_matrix, *, tm=None, vmem_budget=10 << 20):
    """get_part_pool(pool='avg', no_overlap=True) + view(B, C, block).

    feat        : (B, C, H, W) backbone feature map
    ring_matrix : (H*W, block) from build_ring_matrix
    returns     : (B, C, block)
    """
    B, C, H, W = feat.shape
    HW = H * W
    BLK = ring_matrix.shape[1]
    assert ring_matrix.shape[0] == HW
    M = B * C
    assert M % 8 == 0, "B*C must be a multiple of 8"

    itm = feat.dtype.itemsize

    def vmem_est(t):
        # double-buffered x block + lane-padded double-buffered out block +
        # resident (double-buffered) ring matrix.
        x_buf = 2 * t * HW * itm
        o_buf = 2 * t * max(BLK, 128) * itm
        r_buf = 2 * HW * max(BLK, 128) * ring_matrix.dtype.itemsize
        return x_buf + o_buf + r_buf

    if tm is None:
        cands = sorted((d for d in range(8, M + 1, 8) if M % d == 0), reverse=True)
        tm = cands[-1]
        for cand in cands:
            if vmem_est(cand) <= vmem_budget:
                tm = cand
                break
    assert M % tm == 0 and tm % 8 == 0

    x = feat.reshape(M, HW)             # free reshape, native NCHW layout

    out = pl.pallas_call(
        _lpn_pool_kernel,
        out_shape=jax.ShapeDtypeStruct((M, BLK), feat.dtype),
        grid_spec=pltpu.PrefetchScalarGridSpec(
            num_scalar_prefetch=0,
            grid=(M // tm,),
            in_specs=[
                pl.BlockSpec((tm, HW), lambda i: (i, 0)),    # feature rows
                pl.BlockSpec((HW, BLK), lambda i: (0, 0)),   # ring weights (resident)
            ],
            out_specs=pl.BlockSpec((tm, BLK), lambda i: (i, 0)),
        ),
        compiler_params=pltpu.CompilerParams(
            dimension_semantics=("parallel",)),
    )(x, ring_matrix)
    return out.reshape(B, C, BLK)


# ---------------------------------------------------------------------------
# Pure-JAX reference mirroring the PyTorch get_part_pool loop literally.
# ---------------------------------------------------------------------------
def ref_get_part_pool_avg(x, block=6):
    B, C, H, W = x.shape
    c_h, c_w = H // 2, W // 2
    per_h = math.floor(H / (2 * block))
    per_w = math.floor(W / (2 * block))
    result = []
    for i in range(1, block + 1):
        if i < block:
            x_curr = x[:, :, c_h - i * per_h:c_h + i * per_h,
                             c_w - i * per_w:c_w + i * per_w]
            if i > 1:
                x_pre = x[:, :, c_h - (i - 1) * per_h:c_h + (i - 1) * per_h,
                                c_w - (i - 1) * per_w:c_w + (i - 1) * per_w]
                # F.pad(x_pre, (per_h, per_h, per_w, per_w)): W padded by per_h,
                # H padded by per_w.
                x_pad = jnp.pad(x_pre, ((0, 0), (0, 0),
                                        (per_w, per_w), (per_h, per_h)))
                x_curr = x_curr - x_pad
            avg = x_curr.mean(axis=(2, 3))
        else:
            x_pre = x[:, :, c_h - (i - 1) * per_h:c_h + (i - 1) * per_h,
                            c_w - (i - 1) * per_w:c_w + (i - 1) * per_w]
            pad_h = c_h - (i - 1) * per_h
            pad_w = c_w - (i - 1) * per_w
            x_pad = jnp.pad(x_pre, ((0, 0), (0, 0),
                                    (pad_w, pad_w), (pad_h, pad_h)))
            avg = (x - x_pad).mean(axis=(2, 3))
        result.insert(0, avg)
    return jnp.stack(result, axis=2)    # (B, C, block)


if __name__ == "__main__":
    # TODO(synk): the pretrained ResNet50 backbone (conv1..layer4) is not
    # re-implemented here; `feat` stands for its output feature map.
    # TODO(synk): pool='max' / 'avg+max' and the decouple BatchNorm1d branch
    # of the original module are not implemented (defaults are 'avg', False).
    key = jax.random.PRNGKey(0)
    B, C, H, W, block = 2, 64, 16, 16, 6
    feat = jax.random.normal(key, (B, C, H, W), dtype=jnp.float32)

    ring = build_ring_matrix(H, W, block, dtype=feat.dtype)
    y = lpn_part_pool_avg(feat, ring)
    y = jax.block_until_ready(y)

    y_ref = ref_get_part_pool_avg(feat, block=block)
    assert y.shape == (B, C, block)
    assert jnp.allclose(y, y_ref, atol=1e-5, rtol=1e-4), "mismatch vs reference"

    print("KERNEL_OK")
</pallas_src>

<mosaic_0001>
module attributes {stable_mosaic.version = 11 : i64} {
  func.func @_lpn_pool_kernel(%arg0: i32, %arg1: memref<128x256xf32, #tpu.memory_space<vmem>>, %arg2: memref<256x6xf32, #tpu.memory_space<vmem>>, %arg3: memref<128x6xf32, #tpu.memory_space<vmem>>) attributes {dimension_semantics = [#tpu.dimension_semantics<parallel>], iteration_bounds = array<i64: 1>, scalar_prefetch = 0 : i64, scratch_operands = 0 : i64, tpu.core_type = #tpu.core_type<tc>, window_params = [{transform_indices = @transform_0, window_bounds = array<i64: 128, 256>}, {pipeline_mode = #tpu.pipeline_mode<synchronous>, transform_indices = @transform_1, window_bounds = array<i64: 256, 6>}, {transform_indices = @transform_2, window_bounds = array<i64: 128, 6>}]} {
    %c0 = arith.constant 0 : index
    %c0_0 = arith.constant 0 : index
    %0 = vector.load %arg1[%c0, %c0_0] : memref<128x256xf32, #tpu.memory_space<vmem>>, vector<128x256xf32>
    %c0_1 = arith.constant 0 : index
    %c0_2 = arith.constant 0 : index
    %1 = vector.load %arg2[%c0_1, %c0_2] : memref<256x6xf32, #tpu.memory_space<vmem>>, vector<256x6xf32>
    %cst = arith.constant dense<0.000000e+00> : vector<128x6xf32>
    %2 = tpu.matmul %0, %1, %cst {dimension_numbers = #tpu.dot_dimension_numbers<[1], [0], [0], [1], [0, 0, 1, 1], [], []>} : vector<128x256xf32>, vector<256x6xf32>, vector<128x6xf32> -> vector<128x6xf32>
    %c0_3 = arith.constant 0 : index
    %c0_4 = arith.constant 0 : index
    %3 = vector.load %arg3[%c0_3, %c0_4] : memref<128x6xf32, #tpu.memory_space<vmem>>, vector<128x6xf32>
    tpu.vector_store %arg3[%c0_3, %c0_4], %2 {strides = array<i32>} : memref<128x6xf32, #tpu.memory_space<vmem>>, vector<128x6xf32>,
    return
  }
  func.func @transform_0(%arg0: i32) -> (i32, i32) {
    %c0_i32 = arith.constant 0 : i32
    %c0_i32_0 = arith.constant 0 : i32
    return %arg0, %c0_i32 : i32, i32
  }
  func.func @transform_1(%arg0: i32) -> (i32, i32) {
    %c0_i32 = arith.constant 0 : i32
    %c0_i32_0 = arith.constant 0 : i32
    %c0_i32_1 = arith.constant 0 : i32
    return %c0_i32, %c0_i32_0 : i32, i32
  }
  func.func @transform_2(%arg0: i32) -> (i32, i32) {
    %c0_i32 = arith.constant 0 : i32
    %c0_i32_0 = arith.constant 0 : i32
    return %arg0, %c0_i32 : i32, i32
  }
}

</mosaic_0001>

<llo_original>
// kernel: tpu_custom_call.1
$region0: #{tpu_custom_call.1}
  #allocation0 [shape = 'u32[]', space=smem, size = 0x4, offset = 0x4, fixed_abs, tag = 'smem constant byte address 0x4 - core index']
  #allocation1 [shape = 'u32[144,128]{1,0:T(1,128)}', space=vmem, size = 0x12000, scoped, tag = 'internal scratch']
  %s0 = inlined_call_operand.vmem [shape: f32[128,256], index: 0, kind: input, shape index: {}]
  %s1 = inlined_call_operand.vmem [shape: f32[256,6], index: 1, kind: input, shape index: {}]
  %s2 = inlined_call_operand.vmem [shape: f32[128,6], index: 2, kind: output, shape index: {}]
  %s3 = sld [smem:[#allocation0]]
  $region18: #{tpu_custom_call.1} parent=0
    _
  %s5 = ssub.s32 1, %s3
  %s6 = scalar_select 0, %s5, %s3
  // Predicated region
  $region2: #{tpu_custom_call.1} parent=0 // pred_check
    _
  $region3: #{tpu_custom_call.1} parent=0 // pred_check_branch
    %8 = sbr.rel (0) target = $region5
  $region4: #{tpu_custom_call.1} parent=0 // pred_region
    _
  $region5: #{tpu_custom_call.1} parent=0 // pred_fallthru
    _
  // Predicated region
  $region6: #{tpu_custom_call.1} parent=0 // pred_check
    _
  $region7: #{tpu_custom_call.1} parent=0 // pred_check_branch
    %10 = sbr.rel (0) target = $region9
  $region8: #{tpu_custom_call.1} parent=0 // pred_region
    _
  $region9: #{tpu_custom_call.1} parent=0 // pred_fallthru
    _
  %v11 = vld [vmem:[%s0] sm:$0xff]
  %v12 = vld [vmem:[%s0 + $0x8] sm:$0xff]
  %v13 = vld [vmem:[%s0 + $0x10] sm:$0xff]
  %v14 = vld [vmem:[%s0 + $0x18] sm:$0xff]
  %v15 = vld [vmem:[%s0 + $0x20] sm:$0xff]
  %v16 = vld [vmem:[%s0 + $0x28] sm:$0xff]
  %v17 = vld [vmem:[%s0 + $0x30] sm:$0xff]
  %v18 = vld [vmem:[%s0 + $0x38] sm:$0xff]
  %v19 = vld [vmem:[%s0 + $0x40] sm:$0xff]
  %v20 = vld [vmem:[%s0 + $0x48] sm:$0xff]
  %v21 = vld [vmem:[%s0 + $0x50] sm:$0xff]
  %v22 = vld [vmem:[%s0 + $0x58] sm:$0xff]
  %v23 = vld [vmem:[%s0 + $0x60] sm:$0xff]
  %v24 = vld [vmem:[%s0 + $0x68] sm:$0xff]
  %v25 = vld [vmem:[%s0 + $0x70] sm:$0xff]
  %v26 = vld [vmem:[%s0 + $0x78] sm:$0xff]
  %v27 = vld [vmem:[%s0 + $0x80] sm:$0xff]
  %v28 = vld [vmem:[%s0 + $0x88] sm:$0xff]
  %v29 = vld [vmem:[%s0 + $0x90] sm:$0xff]
  %v30 = vld [vmem:[%s0 + $0x98] sm:$0xff]
  %v31 = vld [vmem:[%s0 + $0xa0] sm:$0xff]
  %v32 = vld [vmem:[%s0 + $0xa8] sm:$0xff]
  %v33 = vld [vmem:[%s0 + $0xb0] sm:$0xff]
  %v34 = vld [vmem:[%s0 + $0xb8] sm:$0xff]
  %v35 = vld [vmem:[%s0 + $0xc0] sm:$0xff]
  %v36 = vld [vmem:[%s0 + $0xc8] sm:$0xff]
  %v37 = vld [vmem:[%s0 + $0xd0] sm:$0xff]
  %v38 = vld [vmem:[%s0 + $0xd8] sm:$0xff]
  %v39 = vld [vmem:[%s0 + $0xe0] sm:$0xff]
  %v40 = vld [vmem:[%s0 + $0xe8] sm:$0xff]
  %v41 = vld [vmem:[%s0 + $0xf0] sm:$0xff]
  %v42 = vld [vmem:[%s0 + $0xf8] sm:$0xff]
  %v43 = vld [vmem:[%s1] sm:$0xff]
  %v44 = vld [vmem:[%s1 + $0x8] sm:$0xff]
  %v45 = vld [vmem:[%s1 + $0x10] sm:$0xff]
  %v46 = vld [vmem:[%s1 + $0x18] sm:$0xff]
  %v47 = vld [vmem:[%s1 + $0x20] sm:$0xff]
  %v48 = vld [vmem:[%s1 + $0x28] sm:$0xff]
  %v49 = vld [vmem:[%s1 + $0x30] sm:$0xff]
  %v50 = vld [vmem:[%s1 + $0x38] sm:$0xff]
  %v51 = vld [vmem:[%s1 + $0x40] sm:$0xff]
  %v52 = vld [vmem:[%s1 + $0x48] sm:$0xff]
  %v53 = vld [vmem:[%s1 + $0x50] sm:$0xff]
  %v54 = vld [vmem:[%s1 + $0x58] sm:$0xff]
  %v55 = vld [vmem:[%s1 + $0x60] sm:$0xff]
  %v56 = vld [vmem:[%s1 + $0x68] sm:$0xff]
  %v57 = vld [vmem:[%s1 + $0x70] sm:$0xff]
  %v58 = vld [vmem:[%s1 + $0x78] sm:$0xff]
  %v59 = vld [vmem:[%s1 + $0x80] sm:$0xff]
  %v60 = vld [vmem:[%s1 + $0x88] sm:$0xff]
  %v61 = vld [vmem:[%s1 + $0x90] sm:$0xff]
  %v62 = vld [vmem:[%s1 + $0x98] sm:$0xff]
  %v63 = vld [vmem:[%s1 + $0xa0] sm:$0xff]
  %v64 = vld [vmem:[%s1 + $0xa8] sm:$0xff]
  %v65 = vld [vmem:[%s1 + $0xb0] sm:$0xff]
  %v66 = vld [vmem:[%s1 + $0xb8] sm:$0xff]
  %v67 = vld [vmem:[%s1 + $0xc0] sm:$0xff]
  %v68 = vld [vmem:[%s1 + $0xc8] sm:$0xff]
  %v69 = vld [vmem:[%s1 + $0xd0] sm:$0xff]
  %v70 = vld [vmem:[%s1 + $0xd8] sm:$0xff]
  %v71 = vld [vmem:[%s1 + $0xe0] sm:$0xff]
  %v72 = vld [vmem:[%s1 + $0xe8] sm:$0xff]
  %v73 = vld [vmem:[%s1 + $0xf0] sm:$0xff]
  %v74 = vld [vmem:[%s1 + $0xf8] sm:$0xff]
  %75 = vmatprep.subr.mxu0 0.0
  %76 = vmatpush1.msra.mxu0 %v43
  %77 = vmatprep.subr.mxu0 0.0
  %78 = vmatpush1.msra.mxu0 %v44
  %79 = vmatprep.subr.mxu0 0.0
  %80 = vmatpush1.msra.mxu0 %v45
  %81 = vmatprep.subr.mxu0 0.0
  %82 = vmatpush1.msra.mxu0 %v46
  %83 = vmatprep.subr.mxu0 0.0
  %84 = vmatpush1.msra.mxu0 %v47
  %85 = vmatprep.subr.mxu0 0.0
  %86 = vmatpush1.msra.mxu0 %v48
  %87 = vmatprep.subr.mxu0 0.0
  %88 = vmatpush1.msra.mxu0 %v49
  %89 = vmatprep.subr.mxu0 0.0
  %90 = vmatpush1.msra.mxu0 %v50
  %91 = vmatprep.subr.mxu0 0.0
  %92 = vmatpush1.msra.mxu0 %v51
  %93 = vmatprep.subr.mxu0 0.0
  %94 = vmatpush1.msra.mxu0 %v52
  %95 = vmatprep.subr.mxu0 0.0
  %96 = vmatpush1.msra.mxu0 %v53
  %97 = vmatprep.subr.mxu0 0.0
  %98 = vmatpush1.msra.mxu0 %v54
  %99 = vmatprep.subr.mxu0 0.0
  %100 = vmatpush1.msra.mxu0 %v55
  %101 = vmatprep.subr.mxu0 0.0
  %102 = vmatpush1.msra.mxu0 %v56
  %103 = vmatprep.subr.mxu0 0.0
  %104 = vmatpush1.msra.mxu0 %v57
  %105 = vmatprep.subr.mxu0 0.0
  %106 = vmatpush1.msra.mxu0 %v58
  %107 = vmatprep.subr.mxu0 0.0
  %108 = vmatpush1.msra.mxu0 %v59
  %109 = vmatprep.subr.mxu0 0.0
  %110 = vmatpush1.msra.mxu0 %v60
  %111 = vmatprep.subr.mxu0 0.0
  %112 = vmatpush1.msra.mxu0 %v61
  %113 = vmatprep.subr.mxu0 0.0
  %114 = vmatpush1.msra.mxu0 %v62
  %115 = vmatprep.subr.mxu0 0.0
  %116 = vmatpush1.msra.mxu0 %v63
  %117 = vmatprep.subr.mxu0 0.0
  %118 = vmatpush1.msra.mxu0 %v64
  %119 = vmatprep.subr.mxu0 0.0
  %120 = vmatpush1.msra.mxu0 %v65
  %121 = vmatprep.subr.mxu0 0.0
  %122 = vmatpush1.msra.mxu0 %v66
  %123 = vmatprep.subr.mxu0 0.0
  %124 = vmatpush1.msra.mxu0 %v67
  %125 = vmatprep.subr.mxu0 0.0
  %126 = vmatpush1.msra.mxu0 %v68
  %127 = vmatprep.subr.mxu0 0.0
  %128 = vmatpush1.msra.mxu0 %v69
  %129 = vmatprep.subr.mxu0 0.0
  %130 = vmatpush1.msra.mxu0 %v70
  %131 = vmatprep.subr.mxu0 0.0
  %132 = vmatpush1.msra.mxu0 %v71
  %133 = vmatprep.subr.mxu0 0.0
  %134 = vmatpush1.msra.mxu0 %v72
  %135 = vmatprep.subr.mxu0 0.0
  %136 = vmatpush1.msra.mxu0 %v73
  %137 = vmatprep.subr.mxu0 0.0
  %138 = vmatpush1.msra.mxu0 %v74
  %139 = vmatprep.mubr.f32.mxu0 %v12
  %140 = vmatmul.mubr.f32.gmra.mrb[0].mxu0 %v11
  %v141 = vpop.f32.mrb[0].mxu0
  %v142 = vadd.f32 0.0, %v141
  %v143 = vpop.f32.mrb[0].mxu0
  %144 = vmatprep.mubr.f32.mxu0 %v14
  %145 = vmatmul.mubr.f32.gmra.mrb[0].mxu0 %v13
  %v146 = vpop.f32.mrb[0].mxu0
  %v147 = vadd.f32 0.0, %v146
  %v148 = vpop.f32.mrb[0].mxu0
  %149 = vmatprep.mubr.f32.mxu0 %v16
  %150 = vmatmul.mubr.f32.gmra.mrb[0].mxu0 %v15
  %v151 = vpop.f32.mrb[0].mxu0
  %v152 = vadd.f32 0.0, %v151
  %v153 = vpop.f32.mrb[0].mxu0
  %154 = vmatprep.mubr.f32.mxu0 %v18
  %155 = vmatmul.mubr.f32.gmra.mrb[0].mxu0 %v17
  %v156 = vpop.f32.mrb[0].mxu0
  %v157 = vadd.f32 0.0, %v156
  %v158 = vpop.f32.mrb[0].mxu0
  %159 = vmatprep.mubr.f32.mxu0 %v20
  %160 = vmatmul.mubr.f32.gmra.mrb[0].mxu0 %v19
  %v161 = vpop.f32.mrb[0].mxu0
  %v162 = vadd.f32 0.0, %v161
  %v163 = vpop.f32.mrb[0].mxu0
  %164 = vmatprep.mubr.f32.mxu0 %v22
  %165 = vmatmul.mubr.f32.gmra.mrb[0].mxu0 %v21
  %v166 = vpop.f32.mrb[0].mxu0
  %v167 = vadd.f32 0.0, %v166
  %v168 = vpop.f32.mrb[0].mxu0
  %169 = vmatprep.mubr.f32.mxu0 %v24
  %170 = vmatmul.mubr.f32.gmra.mrb[0].mxu0 %v23
  %v171 = vpop.f32.mrb[0].mxu0
  %v172 = vadd.f32 0.0, %v171
  %v173 = vpop.f32.mrb[0].mxu0
  %174 = vmatprep.mubr.f32.mxu0 %v26
  %175 = vmatmul.mubr.f32.gmra.mrb[0].mxu0 %v25
  %v176 = vpop.f32.mrb[0].mxu0
  %v177 = vadd.f32 0.0, %v176
  %v178 = vpop.f32.mrb[0].mxu0
  %179 = vmatprep.mubr.f32.mxu0 %v28
  %180 = vmatmul.mubr.f32.gmra.mrb[0].mxu0 %v27
  %v181 = vpop.f32.mrb[0].mxu0
  %v182 = vadd.f32 0.0, %v181
  %v183 = vpop.f32.mrb[0].mxu0
  %184 = vmatprep.mubr.f32.mxu0 %v30
  %185 = vmatmul.mubr.f32.gmra.mrb[0].mxu0 %v29
  %v186 = vpop.f32.mrb[0].mxu0
  %v187 = vadd.f32 0.0, %v186
  %v188 = vpop.f32.mrb[0].mxu0
  %189 = vmatprep.mubr.f32.mxu0 %v32
  %190 = vmatmul.mubr.f32.gmra.mrb[0].mxu0 %v31
  %v191 = vpop.f32.mrb[0].mxu0
  %v192 = vadd.f32 0.0, %v191
  %v193 = vpop.f32.mrb[0].mxu0
  %194 = vmatprep.mubr.f32.mxu0 %v34
  %195 = vmatmul.mubr.f32.gmra.mrb[0].mxu0 %v33
  %v196 = vpop.f32.mrb[0].mxu0
  %v197 = vadd.f32 0.0, %v196
  %v198 = vpop.f32.mrb[0].mxu0
  %199 = vmatprep.mubr.f32.mxu0 %v36
  %200 = vmatmul.mubr.f32.gmra.mrb[0].mxu0 %v35
  %v201 = vpop.f32.mrb[0].mxu0
  %v202 = vadd.f32 0.0, %v201
  %v203 = vpop.f32.mrb[0].mxu0
  %204 = vmatprep.mubr.f32.mxu0 %v38
  %205 = vmatmul.mubr.f32.gmra.mrb[0].mxu0 %v37
  %v206 = vpop.f32.mrb[0].mxu0
  %v207 = vadd.f32 0.0, %v206
  %v208 = vpop.f32.mrb[0].mxu0
  %209 = vmatprep.mubr.f32.mxu0 %v40
  %210 = vmatmul.mubr.f32.gmra.mrb[0].mxu0 %v39
  %v211 = vpop.f32.mrb[0].mxu0
  %v212 = vadd.f32 0.0, %v211
  %v213 = vpop.f32.mrb[0].mxu0
  %214 = vmatprep.mubr.f32.mxu0 %v42
  %215 = vmatmul.mubr.f32.gmra.mrb[0].mxu0 %v41
  %v216 = vpop.f32.mrb[0].mxu0
  %v217 = vadd.f32 0.0, %v216
  %v218 = vpop.f32.mrb[0].mxu0
  %219 = vdwg.mxu0
  %vm220 = vcmask 48128
  %221 = vst.msk [vmem:[%s2] sm:$0xff] %vm220, %v142
  %222 = vst.msk [vmem:[%s2 + $0x8] sm:$0xff] %vm220, %v147
  %223 = vst.msk [vmem:[%s2 + $0x10] sm:$0xff] %vm220, %v152
  %224 = vst.msk [vmem:[%s2 + $0x18] sm:$0xff] %vm220, %v157
  %225 = vst.msk [vmem:[%s2 + $0x20] sm:$0xff] %vm220, %v162
  %226 = vst.msk [vmem:[%s2 + $0x28] sm:$0xff] %vm220, %v167
  %227 = vst.msk [vmem:[%s2 + $0x30] sm:$0xff] %vm220, %v172
  %228 = vst.msk [vmem:[%s2 + $0x38] sm:$0xff] %vm220, %v177
  %229 = vst.msk [vmem:[%s2 + $0x40] sm:$0xff] %vm220, %v182
  %230 = vst.msk [vmem:[%s2 + $0x48] sm:$0xff] %vm220, %v187
  %231 = vst.msk [vmem:[%s2 + $0x50] sm:$0xff] %vm220, %v192
  %232 = vst.msk [vmem:[%s2 + $0x58] sm:$0xff] %vm220, %v197
  %233 = vst.msk [vmem:[%s2 + $0x60] sm:$0xff] %vm220, %v202
  %234 = vst.msk [vmem:[%s2 + $0x68] sm:$0xff] %vm220, %v207
  %235 = vst.msk [vmem:[%s2 + $0x70] sm:$0xff] %vm220, %v212
  %236 = vst.msk [vmem:[%s2 + $0x78] sm:$0xff] %vm220, %v217
  // Predicated region
  $region10: #{tpu_custom_call.1} parent=0 // pred_check
    _
  $region11: #{tpu_custom_call.1} parent=0 // pred_check_branch
    %238 = sbr.rel (0) target = $region13
  $region12: #{tpu_custom_call.1} parent=0 // pred_region
    _
  $region13: #{tpu_custom_call.1} parent=0 // pred_fallthru
    _
  // Predicated region
  $region14: #{tpu_custom_call.1} parent=0 // pred_check
    _
  $region15: #{tpu_custom_call.1} parent=0 // pred_check_branch
    %240 = sbr.rel (0) target = $region17
  $region16: #{tpu_custom_call.1} parent=0 // pred_region
    _
  $region17: #{tpu_custom_call.1} parent=0 // pred_fallthru
    _

</llo_original>
